<compile_context>
chip_gen: v7x
topology: tpu7x:2x2x1
jax: 0.10.0
libtpu: 0.0.40
codegen_flags: <defaults>
</compile_context>

<pallas_src>
import functools

import jax
import jax.numpy as jnp
from jax.experimental import pallas as pl
from jax.experimental.pallas import tpu as pltpu

_MiB = 1024 * 1024


def _round_up(a: int, b: int) -> int:
    return (a + b - 1) // b * b


# ---------------------------------------------------------------------------
# Generation-aware VMEM budgeting and tile selection
# ---------------------------------------------------------------------------

def _physical_vmem_bytes() -> int:
    """Per-TensorCore VMEM capacity; conservative (v7x: 64 MiB) on failure."""
    try:
        info = pltpu.get_tpu_info()
        for attr in ("vmem_capacity_bytes", "vmem_bytes", "vmem_size_bytes"):
            v = getattr(info, attr, None)
            if isinstance(v, int) and v > 0:
                return v
    except Exception:
        pass
    return 64 * _MiB


def _vmem_limit_bytes() -> int:
    # Never hand the compiler the full physical VMEM (64 MiB == everything on
    # v7x); leave ~16 MiB headroom for compiler-internal temps / semaphores.
    return max(32 * _MiB, _physical_vmem_bytes() - 16 * _MiB)


def _vmem_need(tm: int, th: int, dim: int, cd_bytes: int, out_bytes: int) -> int:
    """Estimated VMEM for one grid step (double-buffered blocks + scratch + temps)."""
    return (2 * tm * dim * cd_bytes          # x block (double-buffered, resident)
            + 2 * dim * 2 * th * cd_bytes    # [W1|W3] tile
            + 2 * th * dim * cd_bytes        # W2 tile
            + 2 * tm * dim * out_bytes       # output block
            + tm * dim * 4                   # f32 accumulator scratch
            + tm * 3 * th * 4)               # in-kernel f32 temps h13 (tm,2th) + g (tm,th)


def choose_hidden_tile(dim: int, hidden: int, *,
                       compute_dtype=jnp.bfloat16, vmem_limit=None) -> int:
    """Pick TH at weight-pack time (M-independent).

    Larger TH means fewer reduction steps -> less f32 accumulator RMW traffic
    and less per-step pipeline overhead. Budget assumes a prefill-sized TM=512.
    """
    cd = jnp.dtype(compute_dtype).itemsize
    if vmem_limit is None:
        vmem_limit = _vmem_limit_bytes()
    th_cap = _round_up(min(hidden, 2048), 128)
    for th in (2048, 1024, 512, 256, 128):
        th = min(th, th_cap)
        if _vmem_need(512, th, dim, cd, out_bytes=cd) <= vmem_limit:
            return th
    return min(128, th_cap)


def choose_token_tile(M: int, dim: int, th: int, *,
                      compute_dtype=jnp.bfloat16, out_dtype=None,
                      vmem_limit=None) -> int:
    """Pick TM per call. TM is the arithmetic-intensity knob for weight
    streaming (FLOP/byte ~= TM), so prefer it large (512) before shrinking."""
    cd = jnp.dtype(compute_dtype).itemsize
    ob = jnp.dtype(out_dtype if out_dtype is not None else compute_dtype).itemsize
    if vmem_limit is None:
        vmem_limit = _vmem_limit_bytes()
    # Round small-M fallback to 16 (bf16 sublane packing), not 8.
    tm_cap = _round_up(min(M, 512), 16)
    for tm in (512, 256, 128, 64, 32, 16):
        tm = min(tm, tm_cap)
        if _vmem_need(tm, th, dim, cd, ob) <= vmem_limit:
            return tm
    return min(16, tm_cap)


# ---------------------------------------------------------------------------
# One-time weight packing (do at model-load time, NOT inside the hot path)
# ---------------------------------------------------------------------------

def pack_ffn_weights(w1, w3, w2, *, th=None, compute_dtype=jnp.bfloat16):
    """Cast to the compute dtype, zero-pad hidden to a TH multiple, and
    interleave W1/W3 per hidden tile into one contiguous [W1_h | W3_h] slab.

      w1, w3 : (dim, hidden)  -- transpose of PyTorch nn.Linear.weight
      w2     : (hidden, dim)

    Returns (w13, w2p, th) with w13: (dim, 2*H_pad), w2p: (H_pad, dim).
    """
    dim, hidden = w1.shape
    if th is None:
        th = choose_hidden_tile(dim, hidden, compute_dtype=compute_dtype)
    H_pad = _round_up(hidden, th)
    n_h = H_pad // th

    w1c = w1.astype(compute_dtype)
    w3c = w3.astype(compute_dtype)
    w2c = w2.astype(compute_dtype)
    if H_pad != hidden:
        pad = H_pad - hidden
        w1c = jnp.pad(w1c, ((0, 0), (0, pad)))
        w3c = jnp.pad(w3c, ((0, 0), (0, pad)))
        w2c = jnp.pad(w2c, ((0, pad), (0, 0)))

    # TODO(synk): optional int8 (v5e/v6e) or fp8 (v7x) weight storage with
    # per-channel scales would halve the weight HBM traffic for decode.
    w13 = jnp.concatenate(
        [w1c.reshape(dim, n_h, th), w3c.reshape(dim, n_h, th)], axis=2
    ).reshape(dim, 2 * H_pad)
    return w13, w2c, th


# ---------------------------------------------------------------------------
# Kernel
# ---------------------------------------------------------------------------

def _swiglu_ffn_kernel(x_ref, w13_ref, w2_ref, o_ref, acc_ref, *, th: int):
    # x_ref   : (TM, dim)       compute dtype, resident across the hidden axis
    # w13_ref : (dim, 2*TH)     [W1_tile | W3_tile] for this hidden tile
    # w2_ref  : (TH, dim)
    # o_ref   : (TM, dim)       out dtype
    # acc_ref : (TM, dim)       f32 VMEM accumulator (scratch)
    h = pl.program_id(1)

    @pl.when(h == 0)
    def _():
        acc_ref[...] = jnp.zeros_like(acc_ref)

    x = x_ref[...]

    # Fused up-projection for both branches: one MXU pass over x.
    h13 = jnp.dot(x, w13_ref[...], preferred_element_type=jnp.float32)  # (TM, 2*TH)
    h1 = h13[:, :th]
    h3 = h13[:, th:]

    # SwiGLU in f32 on VPU/EUP (free slots relative to the MXU).
    g = (h1 * jax.nn.sigmoid(h1)) * h3

    # Partial down-projection, accumulated in f32.
    acc_ref[...] += jnp.dot(
        g.astype(w2_ref.dtype), w2_ref[...], preferred_element_type=jnp.float32
    )

    # TODO(synk): training-mode dropout (p > 0) would apply pltpu.prng_seed /
    # pltpu.stateful_bernoulli on the accumulator here; p = 0.0 -> identity.
    @pl.when(h == pl.num_programs(1) - 1)
    def _():
        o_ref[...] = acc_ref[...].astype(o_ref.dtype)


# ---------------------------------------------------------------------------
# Forward with pre-packed weights (the hot path)
# ---------------------------------------------------------------------------

def feedforward_pallas_packed(x, w13, w2p, *, th, tm=None,
                              compute_dtype=jnp.bfloat16, out_dtype=None,
                              weight_buffers: int = 2):
    """SwiGLU FFN forward. x: (batch, seq, dim) -> (batch, seq, dim)."""
    batch, seq, dim = x.shape
    H_pad = w2p.shape[0]
    assert w13.shape == (dim, 2 * H_pad)
    assert H_pad % th == 0
    n_h = H_pad // th
    M = batch * seq

    out_dtype = compute_dtype if out_dtype is None else out_dtype
    vmem_limit = _vmem_limit_bytes()
    if tm is None:
        tm = choose_token_tile(M, dim, th, compute_dtype=compute_dtype,
                               out_dtype=out_dtype, vmem_limit=vmem_limit)
    M_pad = _round_up(M, tm)

    x2d = x.reshape(M, dim).astype(compute_dtype)
    if M_pad != M:
        x2d = jnp.pad(x2d, ((0, M_pad - M), (0, 0)))

    # Weight specs; deeper pipelining (Buffered(3)) only helps when VMEM is
    # plentiful (v5e/v6e, 128 MiB) and DMA is marginally exposed.
    w_pipeline = {} if weight_buffers <= 2 else {"pipeline_mode": pl.Buffered(weight_buffers)}
    w13_spec = pl.BlockSpec((dim, 2 * th), lambda i, h: (0, h), **w_pipeline)
    w2_spec = pl.BlockSpec((th, dim), lambda i, h: (h, 0), **w_pipeline)

    kernel = functools.partial(_swiglu_ffn_kernel, th=th)

    # TODO(synk): v7x decode (single token tile) leaves the 2nd TensorCore
    # idle; a core_map variant splitting the hidden reduction across cores
    # with a final partial-sum add would recover it.
    out2d = pl.pallas_call(
        kernel,
        out_shape=jax.ShapeDtypeStruct((M_pad, dim), out_dtype),
        grid_spec=pltpu.PrefetchScalarGridSpec(
            num_scalar_prefetch=0,
            grid=(M_pad // tm, n_h),  # (token tiles, hidden tiles); reduction last
            in_specs=[
                pl.BlockSpec((tm, dim), lambda i, h: (i, 0)),  # x (resident over h)
                w13_spec,                                      # [W1|W3] tile
                w2_spec,                                       # W2 tile
            ],
            out_specs=pl.BlockSpec((tm, dim), lambda i, h: (i, 0)),
            scratch_shapes=[pltpu.VMEM((tm, dim), jnp.float32)],  # f32 accumulator
        ),
        compiler_params=pltpu.CompilerParams(
            dimension_semantics=("parallel", "arbitrary"),
            vmem_limit_bytes=vmem_limit,
        ),
    )(x2d, w13, w2p)

    if M_pad != M:
        out2d = out2d[:M]
    return out2d.reshape(batch, seq, dim)


def feedforward_pallas(x, w1, w3, w2, *, tm=None, th=None,
                       compute_dtype=jnp.bfloat16, out_dtype=None):
    """Convenience path (packs weights per call). For real inference loops,
    call pack_ffn_weights() once and use feedforward_pallas_packed()."""
    w13, w2p, th = pack_ffn_weights(w1, w3, w2, th=th, compute_dtype=compute_dtype)
    return feedforward_pallas_packed(x, w13, w2p, th=th, tm=tm,
                                     compute_dtype=compute_dtype,
                                     out_dtype=out_dtype)


def _hidden_dim(dim: int, multiple_of: int) -> int:
    hd = 4 * dim
    hd = int(2 * hd / 3)
    hd = multiple_of * ((hd + multiple_of - 1) // multiple_of)
    return hd


if __name__ == "__main__":
    # Small shapes consistent with the module: batch=4, seq=8, dim=64.
    batch, seq, dim = 4, 8, 64
    multiple_of = 32
    hidden = _hidden_dim(dim, multiple_of)  # -> 192

    key = jax.random.PRNGKey(0)
    kx, k1, k3, k2 = jax.random.split(key, 4)

    x = jax.random.normal(kx, (batch, seq, dim), dtype=jnp.float32)

    # PyTorch nn.Linear-style init U(-1/sqrt(fan_in), 1/sqrt(fan_in)),
    # stored (in_features, out_features) == W.T of the PyTorch layout.
    b1 = 1.0 / (dim ** 0.5)
    b2 = 1.0 / (hidden ** 0.5)
    w1 = jax.random.uniform(k1, (dim, hidden), jnp.float32, -b1, b1)
    w3 = jax.random.uniform(k3, (dim, hidden), jnp.float32, -b1, b1)
    w2 = jax.random.uniform(k2, (hidden, dim), jnp.float32, -b2, b2)

    # Path 1 (intended production flow): pack once, run packed forward with
    # explicit small tiles so this toy run exercises BOTH grid axes
    # (2 token tiles x 2 hidden tiles incl. hidden zero-padding 192 -> 256)
    # and the f32 accumulator init/writeback path.
    w13, w2p, th = pack_ffn_weights(w1, w3, w2, th=128)
    out = feedforward_pallas_packed(x, w13, w2p, th=th, tm=16)
    out = jax.block_until_ready(out)
    assert out.shape == (batch, seq, dim)

    # Path 2: fully-default auto-tiling convenience path.
    out_auto = jax.block_until_ready(feedforward_pallas(x, w1, w3, w2))
    assert out_auto.shape == (batch, seq, dim)

    M = batch * seq
    xf = x.reshape(M, dim)
    out2d = out.astype(jnp.float32).reshape(M, dim)
    out2d_auto = out_auto.astype(jnp.float32).reshape(M, dim)

    # bf16-mirror reference (same operand precision / f32 accumulation as kernel).
    xb = xf.astype(jnp.bfloat16)
    w1b, w3b, w2b = (w.astype(jnp.bfloat16) for w in (w1, w3, w2))
    h1b = jnp.dot(xb, w1b, preferred_element_type=jnp.float32)
    h3b = jnp.dot(xb, w3b, preferred_element_type=jnp.float32)
    gb = (h1b * jax.nn.sigmoid(h1b)) * h3b
    ref_bf16 = jnp.dot(gb.astype(jnp.bfloat16), w2b,
                       preferred_element_type=jnp.float32)

    # Full-f32 reference of the SwiGLU FFN semantics (looser tolerance: the
    # kernel intentionally uses bf16 operands / bf16 output for throughput).
    ref_f32 = (jax.nn.silu(xf @ w1) * (xf @ w3)) @ w2

    assert jnp.allclose(out2d, ref_bf16, atol=3e-2, rtol=3e-2)
    assert jnp.allclose(out2d, ref_f32, atol=6e-2, rtol=6e-2)
    assert jnp.allclose(out2d_auto, ref_bf16, atol=3e-2, rtol=3e-2)
    assert jnp.allclose(out2d_auto, ref_f32, atol=6e-2, rtol=6e-2)

    print("KERNEL_OK")
</pallas_src>

<mosaic_0001>
module attributes {stable_mosaic.version = 11 : i64} {
  func.func @_swiglu_ffn_kernel(%arg0: i32, %arg1: i32, %arg2: memref<16x64xbf16, #tpu.memory_space<vmem>>, %arg3: memref<64x256xbf16, #tpu.memory_space<vmem>>, %arg4: memref<128x64xbf16, #tpu.memory_space<vmem>>, %arg5: memref<16x64xbf16, #tpu.memory_space<vmem>>, %arg6: memref<16x64xf32, #tpu.memory_space<vmem>>) attributes {dimension_semantics = [#tpu.dimension_semantics<parallel>, #tpu.dimension_semantics<arbitrary>], iteration_bounds = array<i64: 2, 2>, scalar_prefetch = 0 : i64, scratch_operands = 1 : i64, tpu.core_type = #tpu.core_type<tc>, window_params = [{transform_indices = @transform_0, window_bounds = array<i64: 16, 64>}, {transform_indices = @transform_1, window_bounds = array<i64: 64, 256>}, {transform_indices = @transform_2, window_bounds = array<i64: 128, 64>}, {transform_indices = @transform_3, window_bounds = array<i64: 16, 64>}]} {
    %c0_i32 = arith.constant 0 : i32
    %0 = arith.cmpi eq, %arg1, %c0_i32 : i32
    %1 = arith.extui %0 : i1 to i32
    %c0_i32_0 = arith.constant 0 : i32
    %2 = arith.cmpi ne, %1, %c0_i32_0 : i32
    scf.if %2 {
      %cst_13 = arith.constant 0.000000e+00 : f32
      %24 = vector.broadcast %cst_13 : f32 to vector<16x64xf32>
      %c0_14 = arith.constant 0 : index
      %c0_15 = arith.constant 0 : index
      %25 = vector.load %arg6[%c0_14, %c0_15] : memref<16x64xf32, #tpu.memory_space<vmem>>, vector<16x64xf32>
      tpu.vector_store %arg6[%c0_14, %c0_15], %24 {strides = array<i32>} : memref<16x64xf32, #tpu.memory_space<vmem>>, vector<16x64xf32>,
    } else {
    }
    %c0 = arith.constant 0 : index
    %c0_1 = arith.constant 0 : index
    %3 = vector.load %arg2[%c0, %c0_1] : memref<16x64xbf16, #tpu.memory_space<vmem>>, vector<16x64xbf16>
    %c0_2 = arith.constant 0 : index
    %c0_3 = arith.constant 0 : index
    %4 = vector.load %arg3[%c0_2, %c0_3] : memref<64x256xbf16, #tpu.memory_space<vmem>>, vector<64x256xbf16>
    %cst = arith.constant dense<0.000000e+00> : vector<16x256xf32>
    %5 = tpu.matmul %3, %4, %cst {dimension_numbers = #tpu.dot_dimension_numbers<[1], [0], [0], [1], [0, 0, 1, 1], [], []>} : vector<16x64xbf16>, vector<64x256xbf16>, vector<16x256xf32> -> vector<16x256xf32>
    %6 = vector.extract_strided_slice %5 {offsets = [0, 0], sizes = [16, 128], strides = [1, 1]} : vector<16x256xf32> to vector<16x128xf32>
    %7 = vector.extract_strided_slice %5 {offsets = [0, 128], sizes = [16, 128], strides = [1, 1]} : vector<16x256xf32> to vector<16x128xf32>
    %8 = arith.negf %6 : vector<16x128xf32>
    %9 = math.exp %8 : vector<16x128xf32>
    %cst_4 = arith.constant 1.000000e+00 : f32
    %10 = vector.broadcast %cst_4 : f32 to vector<16x128xf32>
    %11 = arith.addf %10, %9 : vector<16x128xf32>
    %12 = arith.divf %10, %11 : vector<16x128xf32>
    %13 = arith.mulf %6, %12 : vector<16x128xf32>
    %14 = arith.mulf %13, %7 : vector<16x128xf32>
    %c0_5 = arith.constant 0 : index
    %c0_6 = arith.constant 0 : index
    %15 = vector.load %arg6[%c0_5, %c0_6] : memref<16x64xf32, #tpu.memory_space<vmem>>, vector<16x64xf32>
    %16 = arith.truncf %14 : vector<16x128xf32> to vector<16x128xbf16>
    %c0_7 = arith.constant 0 : index
    %c0_8 = arith.constant 0 : index
    %17 = vector.load %arg4[%c0_7, %c0_8] : memref<128x64xbf16, #tpu.memory_space<vmem>>, vector<128x64xbf16>
    %cst_9 = arith.constant dense<0.000000e+00> : vector<16x64xf32>
    %18 = tpu.matmul %16, %17, %cst_9 {dimension_numbers = #tpu.dot_dimension_numbers<[1], [0], [0], [1], [0, 0, 1, 1], [], []>} : vector<16x128xbf16>, vector<128x64xbf16>, vector<16x64xf32> -> vector<16x64xf32>
    %19 = arith.addf %15, %18 : vector<16x64xf32>
    %c0_10 = arith.constant 0 : index
    %c0_11 = arith.constant 0 : index
    %20 = vector.load %arg6[%c0_10, %c0_11] : memref<16x64xf32, #tpu.memory_space<vmem>>, vector<16x64xf32>
    tpu.vector_store %arg6[%c0_10, %c0_11], %19 {strides = array<i32>} : memref<16x64xf32, #tpu.memory_space<vmem>>, vector<16x64xf32>,
    %c1_i32 = arith.constant 1 : i32
    %21 = arith.cmpi eq, %arg1, %c1_i32 : i32
    %22 = arith.extui %21 : i1 to i32
    %c0_i32_12 = arith.constant 0 : i32
    %23 = arith.cmpi ne, %22, %c0_i32_12 : i32
    scf.if %23 {
      %c0_13 = arith.constant 0 : index
      %c0_14 = arith.constant 0 : index
      %24 = vector.load %arg6[%c0_13, %c0_14] : memref<16x64xf32, #tpu.memory_space<vmem>>, vector<16x64xf32>
      %25 = arith.truncf %24 : vector<16x64xf32> to vector<16x64xbf16>
      %c0_15 = arith.constant 0 : index
      %c0_16 = arith.constant 0 : index
      %26 = vector.load %arg5[%c0_15, %c0_16] : memref<16x64xbf16, #tpu.memory_space<vmem>>, vector<16x64xbf16>
      tpu.vector_store %arg5[%c0_15, %c0_16], %25 {strides = array<i32>} : memref<16x64xbf16, #tpu.memory_space<vmem>>, vector<16x64xbf16>,
    } else {
    }
    return
  }
  func.func @transform_0(%arg0: i32, %arg1: i32) -> (i32, i32) {
    %c0_i32 = arith.constant 0 : i32
    %c0_i32_0 = arith.constant 0 : i32
    return %arg0, %c0_i32 : i32, i32
  }
  func.func @transform_1(%arg0: i32, %arg1: i32) -> (i32, i32) {
    %c0_i32 = arith.constant 0 : i32
    %c0_i32_0 = arith.constant 0 : i32
    return %c0_i32, %arg1 : i32, i32
  }
  func.func @transform_2(%arg0: i32, %arg1: i32) -> (i32, i32) {
    %c0_i32 = arith.constant 0 : i32
    %c0_i32_0 = arith.constant 0 : i32
    return %arg1, %c0_i32 : i32, i32
  }
  func.func @transform_3(%arg0: i32, %arg1: i32) -> (i32, i32) {
    %c0_i32 = arith.constant 0 : i32
    %c0_i32_0 = arith.constant 0 : i32
    return %arg0, %c0_i32 : i32, i32
  }
}

</mosaic_0001>

<llo_original>
// kernel: tpu_custom_call.1
$region0: #{tpu_custom_call.1}
  #allocation0 [shape = 'u32[]', space=smem, size = 0x4, offset = 0x4, fixed_abs, tag = 'smem constant byte address 0x4 - core index']
  #allocation1 [shape = 'u32[144,128]{1,0:T(1,128)}', space=vmem, size = 0x12000, scoped, tag = 'internal scratch']
  #allocation2 [shape = 'f32[16,64]{1,0:T(8,128)}', space=vmem, size = 0x2000, scoped, tag = 'scratch operand']
  %s0 = inlined_call_operand.vmem [shape: bf16[32,64], index: 0, kind: input, shape index: {}]
  %s1 = inlined_call_operand.vmem [shape: bf16[64,512], index: 1, kind: input, shape index: {}]
  %s2 = inlined_call_operand.vmem [shape: bf16[256,64], index: 2, kind: input, shape index: {}]
  %s3 = inlined_call_operand.hbm [shape: bf16[32,64], index: 3, kind: output, shape index: {}]
  %s4 = sld [smem:[#allocation0]]
  $region91: #{tpu_custom_call.1} parent=0
    _
  %s6 = ssub.s32 1, %s4
  %s7 = scalar_select 0, %s6, %s4
  $region1: #{tpu_custom_call.1} parent=0
    #allocation3 [shape = 'u8[65536]{0}', space=vmem, size = 0x10000, scoped, tag = 'input window, operand 1']
    #allocation4 [shape = 'u8[8192]{0}', space=vmem, size = 0x2000, scoped, tag = 'output window, operand 0']
    #allocation5 [shape = 's32[2]{0}', space=sflag, size = 0x8, scoped, tag = 'scoped memory for tpu_custom_call.1']
    %8 = vsyncpa [#allocation5], 0
    %s9 = scalar_lea.sflag [#allocation5], 1
    %10 = vsyncpa %s9, 0
    loop: start=0, step=1, limit=6
    $region2: #{tpu_custom_call.1} parent=1 // loop_pre_header
      _
    $region3: #{tpu_custom_call.1} parent=1 // loop_header
      %s12 = sphi 0, %s16
      %p13 = scmp.ge.s32.totalorder %s12, 6
      %s19 = sphi 0, %s31
      %s20 = sphi 0, %s27
      %s21 = sphi 0, %s19
      %s22 = sphi 0, %s20
      %s23 = sphi 0, %s21
      %s24 = sphi 0, %s22
      %s34 = sphi 0, %s36
      %s37 = sphi 0, %s34
      %s38 = sphi 0, %s37
      %s54 = sphi 0, %s38
      %s60 = sphi 0, %s62
      %s63 = sphi 0, %s60
      %s64 = sphi 0, %s63
      %s80 = sphi 0, %s64
      %s86 = sphi 0, %s88
      %s89 = sphi 0, %s86
      %s90 = sphi 0, %s89
      %s106 = sphi 0, %s90
      %s112 = sphi 0, %s114
      %s115 = sphi 0, %s112
      %s116 = sphi 0, %s115
      %s132 = sphi 0, %s116
    $region4: #{tpu_custom_call.1} parent=1 // loop_header_branch
      %15 = sbr.rel (%p13) target = $region8
    $region5: #{tpu_custom_call.1} parent=1 // loop_body
      %s17 = ssub.s32 %s12, 1
      %s18 = ssub.s32 %s12, 2
      %s25 = sadd.s32 1, %s20
      %p26 = scmp.ge.s32.totalorder %s25, 2
      %s27 = scalar_select %p26, 0, %s25
      %s28 = sadd.s32 1, %s19
      %s29 = scalar_select %p26, %s28, %s19
      %p30 = scmp.ge.s32.totalorder %s29, 2
      %s31 = scalar_select %p30, 0, %s29
      %s32 = ssub.s32 %s19, %s31
      %p33 = scmp.eq.s32.totalorder %s32, 0
      %s35 = sadd.s32 %s34, 1
      %s36 = scalar_select %p33, %s34, %s35
      %p39 = pneg %p33
      %p40 = scmp.eq.s32.totalorder %s12, 3
      %p41 = por %p39, %p40
      %p42 = scmp.ne.s32.totalorder %s34, %s37
      %p43 = scmp.eq.s32.totalorder %s12, 0
      %p44 = por %p42, %p43
      %p45 = scmp.ne.s32.totalorder %s34, %s37
      %p46 = scmp.eq.s32.totalorder %s17, 3
      %p47 = por %p45, %p46
      %p48 = scmp.ne.s32.totalorder %s37, %s38
      %p49 = scmp.eq.s32.totalorder %s17, 0
      %p50 = por %p48, %p49
      %p51 = scmp.ne.s32.totalorder %s37, %s38
      %p52 = scmp.eq.s32.totalorder %s18, 3
      %p53 = por %p51, %p52
      %p55 = scmp.ne.s32.totalorder %s38, %s54
      %p56 = scmp.eq.s32.totalorder %s18, 0
      %p57 = por %p55, %p56
      %s58 = ssub.s32 %s20, %s27
      %p59 = scmp.eq.s32.totalorder %s58, 0
      %s61 = sadd.s32 %s60, 1
      %s62 = scalar_select %p59, %s60, %s61
      %p65 = pneg %p59
      %p66 = scmp.eq.s32.totalorder %s12, 3
      %p67 = por %p65, %p66
      %p68 = scmp.ne.s32.totalorder %s60, %s63
      %p69 = scmp.eq.s32.totalorder %s12, 0
      %p70 = por %p68, %p69
      %p71 = scmp.ne.s32.totalorder %s60, %s63
      %p72 = scmp.eq.s32.totalorder %s17, 3
      %p73 = por %p71, %p72
      %p74 = scmp.ne.s32.totalorder %s63, %s64
      %p75 = scmp.eq.s32.totalorder %s17, 0
      %p76 = por %p74, %p75
      %p77 = scmp.ne.s32.totalorder %s63, %s64
      %p78 = scmp.eq.s32.totalorder %s18, 3
      %p79 = por %p77, %p78
      %p81 = scmp.ne.s32.totalorder %s64, %s80
      %p82 = scmp.eq.s32.totalorder %s18, 0
      %p83 = por %p81, %p82
      %s84 = ssub.s32 %s20, %s27
      %p85 = scmp.eq.s32.totalorder %s84, 0
      %s87 = sadd.s32 %s86, 1
      %s88 = scalar_select %p85, %s86, %s87
      %p91 = pneg %p85
      %p92 = scmp.eq.s32.totalorder %s12, 3
      %p93 = por %p91, %p92
      %p94 = scmp.ne.s32.totalorder %s86, %s89
      %p95 = scmp.eq.s32.totalorder %s12, 0
      %p96 = por %p94, %p95
      %p97 = scmp.ne.s32.totalorder %s86, %s89
      %p98 = scmp.eq.s32.totalorder %s17, 3
      %p99 = por %p97, %p98
      %p100 = scmp.ne.s32.totalorder %s89, %s90
      %p101 = scmp.eq.s32.totalorder %s17, 0
      %p102 = por %p100, %p101
      %p103 = scmp.ne.s32.totalorder %s89, %s90
      %p104 = scmp.eq.s32.totalorder %s18, 3
      %p105 = por %p103, %p104
      %p107 = scmp.ne.s32.totalorder %s90, %s106
      %p108 = scmp.eq.s32.totalorder %s18, 0
      %p109 = por %p107, %p108
      %s110 = ssub.s32 %s19, %s31
      %p111 = scmp.eq.s32.totalorder %s110, 0
      %s113 = sadd.s32 %s112, 1
      %s114 = scalar_select %p111, %s112, %s113
      %p117 = pneg %p111
      %p118 = scmp.eq.s32.totalorder %s12, 3
      %p119 = por %p117, %p118
      %p120 = scmp.ne.s32.totalorder %s112, %s115
      %p121 = scmp.eq.s32.totalorder %s12, 0
      %p122 = por %p120, %p121
      %p123 = scmp.ne.s32.totalorder %s112, %s115
      %p124 = scmp.eq.s32.totalorder %s17, 3
      %p125 = por %p123, %p124
      %p126 = scmp.ne.s32.totalorder %s115, %s116
      %p127 = scmp.eq.s32.totalorder %s17, 0
      %p128 = por %p126, %p127
      %p129 = scmp.ne.s32.totalorder %s115, %s116
      %p130 = scmp.eq.s32.totalorder %s18, 3
      %p131 = por %p129, %p130
      %p133 = scmp.ne.s32.totalorder %s116, %s132
      %p134 = scmp.eq.s32.totalorder %s18, 0
      %p135 = por %p133, %p134
      %p136 = scmp.le.s32.totalorder 1, %s12
      %p137 = scmp.lt.s32.totalorder %s12, 5
      %p138 = pnand %p136, %p137
      %p139 = pneg %p138
      // Predicated region
      $region9: #{tpu_custom_call.1} parent=5 // pred_check
        _
      $region10: #{tpu_custom_call.1} parent=5 // pred_check_branch
        %141 = sbr.rel (%p138) target = $region12
      $region11: #{tpu_custom_call.1} parent=5 // pred_region
        %s142 = ssub.s32 %s12, 1
      $region12: #{tpu_custom_call.1} parent=5 // pred_fallthru
        _
      %p143 = scmp.lt.s32.totalorder %s12, 4
      // Predicated region
      $region13: #{tpu_custom_call.1} parent=5 // pred_check
        %p144 = pneg %p143
      $region14: #{tpu_custom_call.1} parent=5 // pred_check_branch
        %146 = sbr.rel (%p144) target = $region16
      $region15: #{tpu_custom_call.1} parent=5 // pred_region
        // Predicated region
        $region17: #{tpu_custom_call.1} parent=15 // pred_check
          %p147 = pneg %p44
        $region18: #{tpu_custom_call.1} parent=15 // pred_check_branch
          %149 = sbr.rel (%p147) target = $region20
        $region19: #{tpu_custom_call.1} parent=15 // pred_region
          %s150 = smul.u32 2, %s19
          %p151 = scmp.lt.s32.totalorder %s150, 3
          %s152 = scalar_select %p151, %s150, 3
          %s153 = smul.addr %s152, 4
          %s154 = scalar_lea.vmem %s0, %s153
          %s155 = smul.u32 2, %s19
        $region20: #{tpu_custom_call.1} parent=15 // pred_fallthru
          _
        // Predicated region
        $region21: #{tpu_custom_call.1} parent=15 // pred_check
          %p156 = pneg %p70
        $region22: #{tpu_custom_call.1} parent=15 // pred_check_branch
          %158 = sbr.rel (%p156) target = $region24
        $region23: #{tpu_custom_call.1} parent=15 // pred_region
          %s159 = sand.u32 %s60, 1
          %s160 = sand.u32 %s60, 1
          %s161 = smul.addr %s160, 64
          %s162 = scalar_lea.vmem [#allocation3], %s161
          %s163 = smul.u32 2, %s20
          %s164 = smul.addr %s163, 4
          %s165 = scalar_lea.vmem %s1, %s164
          // Predicated region
          $region25: #{tpu_custom_call.1} parent=23 // pred_check
            _
          $region26: #{tpu_custom_call.1} parent=23 // pred_check_branch
            %167 = sbr.rel (0) target = $region28
          $region27: #{tpu_custom_call.1} parent=23 // pred_region
            // Predicated region
            $region29: #{tpu_custom_call.1} parent=27 // pred_check
              _
            $region30: #{tpu_custom_call.1} parent=27 // pred_check_branch
              %169 = sbr.rel (0) target = $region32
            $region31: #{tpu_custom_call.1} parent=27 // pred_region
              // Predicated region
              $region44: #{tpu_custom_call.1} parent=31 // pred_check
                _
              $region45: #{tpu_custom_call.1} parent=31 // pred_check_branch
                %198 = sbr.rel (0) target = $region47
              $region46: #{tpu_custom_call.1} parent=31 // pred_region
                loop: start=0, step=1, limit=1
                $region48: #{tpu_custom_call.1} parent=46 // loop_pre_header
                  _
                $region49: #{tpu_custom_call.1} parent=46 // loop_header
                  %s200 = sphi 0, %s204
                  %p201 = scmp.ge.s32.totalorder %s200, 1
                  %s205 = sphi %s165, %s165
                  %s206 = sphi %s162, %s162
                $region50: #{tpu_custom_call.1} parent=46 // loop_header_branch
                  %203 = sbr.rel (%p201) target = $region54
                $region51: #{tpu_custom_call.1} parent=46 // loop_body
                  %v207 = vld [vmem:[%s205] sm:$0xff]
                  %208 = vst [vmem:[%s206] sm:$0xff] %v207
                  %v209 = vld [vmem:[%s205 + $0x10] sm:$0xff]
                  %210 = vst [vmem:[%s206 + $0x8] sm:$0xff] %v209
                  %v211 = vld [vmem:[%s205 + $0x20] sm:$0xff]
                  %212 = vst [vmem:[%s206 + $0x10] sm:$0xff] %v211
                  %v213 = vld [vmem:[%s205 + $0x30] sm:$0xff]
                  %214 = vst [vmem:[%s206 + $0x18] sm:$0xff] %v213
                  %v215 = vld [vmem:[%s205 + $0x40] sm:$0xff]
                  %216 = vst [vmem:[%s206 + $0x20] sm:$0xff] %v215
                  %v217 = vld [vmem:[%s205 + $0x50] sm:$0xff]
                  %218 = vst [vmem:[%s206 + $0x28] sm:$0xff] %v217
                  %v219 = vld [vmem:[%s205 + $0x60] sm:$0xff]
                  %220 = vst [vmem:[%s206 + $0x30] sm:$0xff] %v219
                  %v221 = vld [vmem:[%s205 + $0x70] sm:$0xff]
                  %222 = vst [vmem:[%s206 + $0x38] sm:$0xff] %v221
                $region52: #{tpu_custom_call.1} parent=46 // loop_footer
                  %s204 = sadd.s32 1, %s200
                $region53: #{tpu_custom_call.1} parent=46 // loop_footer_branch
                  %199 = sbr.rel target = $region49
                $region54: #{tpu_custom_call.1} parent=46 // loop_exit
                  _
              $region47: #{tpu_custom_call.1} parent=31 // pred_fallthru
                _
              // Predicated region
              $region55: #{tpu_custom_call.1} parent=31 // pred_check
                _
              $region56: #{tpu_custom_call.1} parent=31 // pred_check_branch
                %224 = sbr.rel target = $region58
              $region57: #{tpu_custom_call.1} parent=31 // pred_region
                _
              $region58: #{tpu_custom_call.1} parent=31 // pred_fallthru
                _
            $region32: #{tpu_custom_call.1} parent=27 // pred_fallthru
              _
            // Predicated region
            $region33: #{tpu_custom_call.1} parent=27 // pred_check
              _
            $region34: #{tpu_custom_call.1} parent=27 // pred_check_branch
              %171 = sbr.rel target = $region36
            $region35: #{tpu_custom_call.1} parent=27 // pred_region
              loop: start=0, step=1, limit=1
              $region37: #{tpu_custom_call.1} parent=35 // loop_pre_header
                _
              $region38: #{tpu_custom_call.1} parent=35 // loop_header
                %s174 = sphi 0, %s178
                %p175 = scmp.ge.s32.totalorder %s174, 1
                %s179 = sphi %s165, %s165
                %s180 = sphi %s162, %s162
              $region39: #{tpu_custom_call.1} parent=35 // loop_header_branch
                %177 = sbr.rel (%p175) target = $region43
              $region40: #{tpu_custom_call.1} parent=35 // loop_body
                %v181 = vld [vmem:[%s179] sm:$0xff]
                %182 = vst [vmem:[%s180] sm:$0xff] %v181
                %v183 = vld [vmem:[%s179 + $0x10] sm:$0xff]
                %184 = vst [vmem:[%s180 + $0x8] sm:$0xff] %v183
                %v185 = vld [vmem:[%s179 + $0x20] sm:$0xff]
                %186 = vst [vmem:[%s180 + $0x10] sm:$0xff] %v185
                %v187 = vld [vmem:[%s179 + $0x30] sm:$0xff]
                %188 = vst [vmem:[%s180 + $0x18] sm:$0xff] %v187
                %v189 = vld [vmem:[%s179 + $0x40] sm:$0xff]
                %190 = vst [vmem:[%s180 + $0x20] sm:$0xff] %v189
                %v191 = vld [vmem:[%s179 + $0x50] sm:$0xff]
                %192 = vst [vmem:[%s180 + $0x28] sm:$0xff] %v191
                %v193 = vld [vmem:[%s179 + $0x60] sm:$0xff]
                %194 = vst [vmem:[%s180 + $0x30] sm:$0xff] %v193
                %v195 = vld [vmem:[%s179 + $0x70] sm:$0xff]
                %196 = vst [vmem:[%s180 + $0x38] sm:$0xff] %v195
              $region41: #{tpu_custom_call.1} parent=35 // loop_footer
                %s178 = sadd.s32 1, %s174
              $region42: #{tpu_custom_call.1} parent=35 // loop_footer_branch
                %173 = sbr.rel target = $region38
              $region43: #{tpu_custom_call.1} parent=35 // loop_exit
                _
            $region36: #{tpu_custom_call.1} parent=27 // pred_fallthru
              _
          $region28: #{tpu_custom_call.1} parent=23 // pred_fallthru
            _
          %225 = vnop
        $region24: #{tpu_custom_call.1} parent=15 // pred_fallthru
          _
        // Predicated region
        $region59: #{tpu_custom_call.1} parent=15 // pred_check
          %p226 = pneg %p96
        $region60: #{tpu_custom_call.1} parent=15 // pred_check_branch
          %228 = sbr.rel (%p226) target = $region62
        $region61: #{tpu_custom_call.1} parent=15 // pred_region
          %s229 = smul.u32 16, %s20
          %p230 = scmp.lt.s32.totalorder %s229, 31
          %s231 = scalar_select %p230, %s229, 31
          %s232 = smul.addr %s231, 4
          %s233 = scalar_lea.vmem %s2, %s232
          %s234 = smul.u32 16, %s20
        $region62: #{tpu_custom_call.1} parent=15 // pred_fallthru
          _
      $region16: #{tpu_custom_call.1} parent=5 // pred_fallthru
        _
      %p235 = scmp.le.s32.totalorder 1, %s12
      %p236 = scmp.lt.s32.totalorder %s12, 5
      %p237 = pnand %p235, %p236
      %p238 = pneg %p237
      // Predicated region
      $region63: #{tpu_custom_call.1} parent=5 // pred_check
        _
      $region64: #{tpu_custom_call.1} parent=5 // pred_check_branch
        %240 = sbr.rel (%p237) target = $region66
      $region65: #{tpu_custom_call.1} parent=5 // pred_region
        %s241 = ssub.s32 %s12, 1
        %s242 = sand.u32 %s63, 1
        %s243 = sand.u32 %s63, 1
        %s244 = smul.addr %s243, 64
        %s245 = scalar_lea.vmem [#allocation3], %s244
        // Predicated region
        $region67: #{tpu_custom_call.1} parent=65 // pred_check
          %p246 = pneg %p76
        $region68: #{tpu_custom_call.1} parent=65 // pred_check_branch
          %248 = sbr.rel (%p246) target = $region70
        $region69: #{tpu_custom_call.1} parent=65 // pred_region
          _
        $region70: #{tpu_custom_call.1} parent=65 // pred_fallthru
          _
        %s249 = smul.u32 2, %s21
        %p250 = scmp.lt.s32.totalorder %s249, 3
        %s251 = scalar_select %p250, %s249, 3
        %s252 = smul.addr %s251, 4
        %s253 = scalar_lea.vmem %s0, %s252
        %p254 = pneg %p50
        %p255 = pneg %p47
        %s256 = sand.u32 %s63, 1
        %s257 = sand.u32 %s63, 1
        %s258 = smul.addr %s257, 64
        %s259 = scalar_lea.vmem [#allocation3], %s258
        %p260 = pneg %p76
        %p261 = pneg %p73
        %s262 = smul.u32 16, %s22
        %p263 = scmp.lt.s32.totalorder %s262, 31
        %s264 = scalar_select %p263, %s262, 31
        %s265 = smul.addr %s264, 4
        %s266 = scalar_lea.vmem %s2, %s265
        %p267 = pneg %p102
        %p268 = pneg %p99
        %p269 = pneg %p128
        %p270 = pneg %p125
        %s271 = sand.u32 %s115, 1
        %s272 = scalar_lea.sflag [#allocation5], %s271
        %s273 = sand.u32 %s115, 1
        %s274 = smul.addr %s273, 8
        %s275 = scalar_lea.vmem [#allocation4], %s274
        %s276 = smul.u32 2, %s21
        %p277 = scmp.lt.s32.totalorder %s276, 3
        %s278 = scalar_select %p277, %s276, 3
        %s279 = smul.addr %s278, 4
        %s280 = scalar_lea.vmem %s0, %s279
        %s281 = smul.u32 2, %s21
        %s282 = smul.u32 2, %s22
        %s283 = smul.u32 16, %s22
        %p284 = scmp.lt.s32.totalorder %s283, 31
        %s285 = scalar_select %p284, %s283, 31
        %s286 = smul.addr %s285, 4
        %s287 = scalar_lea.vmem %s2, %s286
        %s288 = smul.u32 16, %s22
        %s289 = smul.u32 2, %s21
        %p291 = scmp.eq.s32.totalorder %s22, 0
        // Predicated region
        $region71: #{tpu_custom_call.1} parent=65 // pred_check
          %p292 = pneg %p291
        $region72: #{tpu_custom_call.1} parent=65 // pred_check_branch
          %294 = sbr.rel (%p292) target = $region74
        $region73: #{tpu_custom_call.1} parent=65 // pred_region
          %vm295 = vcmask 523264
          %296 = vst.msk [vmem:[#allocation2] sm:$0xff] %vm295, 0.0
          %297 = vst.msk [vmem:[#allocation2 + $0x8] sm:$0xff] %vm295, 0.0
        $region74: #{tpu_custom_call.1} parent=65 // pred_fallthru
          _
        %v298 = vld [vmem:[%s280] sm:$0xf]
        %v299 = vld [vmem:[%s280 + $0x4] sm:$0xf]
        %v300 = vld [vmem:[%s245] sm:$0xff]
        %v301 = vld [vmem:[%s245 + $0x8] sm:$0xff]
        %v302 = vld [vmem:[%s245 + $0x10] sm:$0xff]
        %v303 = vld [vmem:[%s245 + $0x18] sm:$0xff]
        %v304 = vld [vmem:[%s245 + $0x20] sm:$0xff]
        %v305 = vld [vmem:[%s245 + $0x28] sm:$0xff]
        %v306 = vld [vmem:[%s245 + $0x30] sm:$0xff]
        %v307 = vld [vmem:[%s245 + $0x38] sm:$0xff]
        %v310 = vunpack.c.l.b16 %v298
        %v311 = vunpack.c.l.b16 %v299
        %v312 = vpack.c.b16 %v311, %v310
        %v321 = vunpack.c.l.b16 %v300
        %v322 = vunpack.c.h.b16 %v300
        %v323 = vunpack.c.l.b16 %v301
        %v324 = vunpack.c.h.b16 %v301
        %v325 = vunpack.c.l.b16 %v302
        %v326 = vunpack.c.h.b16 %v302
        %v327 = vunpack.c.l.b16 %v303
        %v328 = vunpack.c.h.b16 %v303
        %v329 = vunpack.c.l.b16 %v304
        %v330 = vunpack.c.h.b16 %v304
        %v331 = vunpack.c.l.b16 %v305
        %v332 = vunpack.c.h.b16 %v305
        %v333 = vunpack.c.l.b16 %v306
        %v334 = vunpack.c.h.b16 %v306
        %v335 = vunpack.c.l.b16 %v307
        %v336 = vunpack.c.h.b16 %v307
        %v337 = vpack.c.b16 %v323, %v321
        %v338 = vpack.c.b16 %v324, %v322
        %v339 = vpack.c.b16 %v327, %v325
        %v340 = vpack.c.b16 %v328, %v326
        %v341 = vpack.c.b16 %v331, %v329
        %v342 = vpack.c.b16 %v332, %v330
        %v343 = vpack.c.b16 %v335, %v333
        %v344 = vpack.c.b16 %v336, %v334
        %vm353 = vcmask 523264
        %v355 = vsel %vm353, %v312, 0
        %357 = vmatprep.subr.bf16.mxu0 %v338
        %358 = vmatpush1.bf16.msra.mxu0 %v337
        %359 = vmatprep.subr.bf16.mxu0 %v340
        %360 = vmatpush1.bf16.msra.mxu0 %v339
        %361 = vmatprep.subr.bf16.mxu0 %v342
        %362 = vmatpush1.bf16.msra.mxu0 %v341
        %363 = vmatprep.subr.bf16.mxu0 %v344
        %364 = vmatpush1.bf16.msra.mxu0 %v343
        %365 = vmatprep.subr.bf16.mxu0 0
        %366 = vmatpush1.bf16.msra.mxu0 0
        %367 = vmatprep.subr.bf16.mxu0 0
        %368 = vmatpush1.bf16.msra.mxu0 0
        %369 = vmatprep.subr.bf16.mxu0 0
        %370 = vmatpush1.bf16.msra.mxu0 0
        %371 = vmatprep.subr.bf16.mxu0 0
        %372 = vmatpush1.bf16.msra.mxu0 0
        %373 = vmatprep.subr.bf16.mxu0 0
        %374 = vmatpush1.bf16.msra.mxu0 0
        %375 = vmatprep.subr.bf16.mxu0 0
        %376 = vmatpush1.bf16.msra.mxu0 0
        %377 = vmatprep.subr.bf16.mxu0 0
        %378 = vmatpush1.bf16.msra.mxu0 0
        %379 = vmatprep.subr.bf16.mxu0 0
        %380 = vmatpush1.bf16.msra.mxu0 0
        %381 = vmatprep.subr.bf16.mxu0 0
        %382 = vmatpush1.bf16.msra.mxu0 0
        %383 = vmatprep.subr.bf16.mxu0 0
        %384 = vmatpush1.bf16.msra.mxu0 0
        %385 = vmatprep.subr.bf16.mxu0 0
        %386 = vmatpush1.bf16.msra.mxu0 0
        %387 = vmatprep.subr.bf16.mxu0 0
        %388 = vmatpush1.bf16.msra.mxu0 0
        %389 = vmatprep.mubr.bf16.mxu0 0
        %390 = vmatmul.mubr.bf16.gmra.mrb[0].mxu0 %v355
        %v391 = vpop.f32.mrb[0].mxu0
        %v392 = vadd.f32 0.0, %v391
        %v393 = vpop.f32.mrb[0].mxu0
        %v394 = vadd.f32 0.0, %v393
        %v395 = vpop.f32.mrb[0].mxu0
        %v396 = vadd.f32 0.0, %v395
        %v397 = vpop.f32.mrb[0].mxu0
        %v398 = vadd.f32 0.0, %v397
        %399 = vdwg.mxu0
        %v400 = vxor.u32 %v392, 2147483648
        %v401 = vxor.u32 %v396, 2147483648
        %v402 = vmul.f32 %v400, 1.442695
        %v403 = vpow.pop %v402
        %v404 = vmul.f32 %v401, 1.442695
        %v405 = vpow.pop %v404
        %v406 = vadd.f32 %v403, 1.0
        %v407 = vadd.f32 %v405, 1.0
        %v408 = vrcp.pop %v406
        %v409 = vmul.f32 1.0, %v408
        %v410 = vrcp.pop %v407
        %v411 = vmul.f32 1.0, %v410
        %v412 = vmul.f32 %v392, %v409
        %v413 = vmul.f32 %v396, %v411
        %v414 = vmul.f32 %v412, %v394
        %v415 = vmul.f32 %v413, %v398
        %v416 = vld [vmem:[#allocation2] sm:$0xff]
        %v417 = vld [vmem:[#allocation2 + $0x8] sm:$0xff]
        %v418 = vpack.c.bf16 %v415, %v414
        %v419 = vld [vmem:[%s287] sm:$0xf]
        %v420 = vld [vmem:[%s287 + $0x4] sm:$0xf]
        %v421 = vld [vmem:[%s287 + $0x8] sm:$0xf]
        %v422 = vld [vmem:[%s287 + $0xc] sm:$0xf]
        %v423 = vld [vmem:[%s287 + $0x10] sm:$0xf]
        %v424 = vld [vmem:[%s287 + $0x14] sm:$0xf]
        %v425 = vld [vmem:[%s287 + $0x18] sm:$0xf]
        %v426 = vld [vmem:[%s287 + $0x1c] sm:$0xf]
        %v427 = vld [vmem:[%s287 + $0x20] sm:$0xf]
        %v428 = vld [vmem:[%s287 + $0x24] sm:$0xf]
        %v429 = vld [vmem:[%s287 + $0x28] sm:$0xf]
        %v430 = vld [vmem:[%s287 + $0x2c] sm:$0xf]
        %v431 = vld [vmem:[%s287 + $0x30] sm:$0xf]
        %v432 = vld [vmem:[%s287 + $0x34] sm:$0xf]
        %v433 = vld [vmem:[%s287 + $0x38] sm:$0xf]
        %v434 = vld [vmem:[%s287 + $0x3c] sm:$0xf]
        %v451 = vunpack.c.l.b16 %v419
        %v452 = vunpack.c.l.b16 %v420
        %v453 = vunpack.c.l.b16 %v421
        %v454 = vunpack.c.l.b16 %v422
        %v455 = vunpack.c.l.b16 %v423
        %v456 = vunpack.c.l.b16 %v424
        %v457 = vunpack.c.l.b16 %v425
        %v458 = vunpack.c.l.b16 %v426
        %v459 = vunpack.c.l.b16 %v427
        %v460 = vunpack.c.l.b16 %v428
        %v461 = vunpack.c.l.b16 %v429
        %v462 = vunpack.c.l.b16 %v430
        %v463 = vunpack.c.l.b16 %v431
        %v464 = vunpack.c.l.b16 %v432
        %v465 = vunpack.c.l.b16 %v433
        %v466 = vunpack.c.l.b16 %v434
        %v467 = vpack.c.b16 %v452, %v451
        %v468 = vpack.c.b16 %v454, %v453
        %v469 = vpack.c.b16 %v456, %v455
        %v470 = vpack.c.b16 %v458, %v457
        %v471 = vpack.c.b16 %v460, %v459
        %v472 = vpack.c.b16 %v462, %v461
        %v473 = vpack.c.b16 %v464, %v463
        %v474 = vpack.c.b16 %v466, %v465
        %483 = vmatprep.subr.bf16.mxu0 0
        %484 = vmatpush1.bf16.msra.mxu0 %v467
        %485 = vmatprep.subr.bf16.mxu0 0
        %486 = vmatpush1.bf16.msra.mxu0 %v468
        %487 = vmatprep.subr.bf16.mxu0 0
        %488 = vmatpush1.bf16.msra.mxu0 %v469
        %489 = vmatprep.subr.bf16.mxu0 0
        %490 = vmatpush1.bf16.msra.mxu0 %v470
        %491 = vmatprep.subr.bf16.mxu0 0
        %492 = vmatpush1.bf16.msra.mxu0 %v471
        %493 = vmatprep.subr.bf16.mxu0 0
        %494 = vmatpush1.bf16.msra.mxu0 %v472
        %495 = vmatprep.subr.bf16.mxu0 0
        %496 = vmatpush1.bf16.msra.mxu0 %v473
        %497 = vmatprep.subr.bf16.mxu0 0
        %498 = vmatpush1.bf16.msra.mxu0 %v474
        %499 = vmatprep.subr.bf16.mxu0 0
        %500 = vmatpush1.bf16.msra.mxu0 0
        %501 = vmatprep.subr.bf16.mxu0 0
        %502 = vmatpush1.bf16.msra.mxu0 0
        %503 = vmatprep.subr.bf16.mxu0 0
        %504 = vmatpush1.bf16.msra.mxu0 0
        %505 = vmatprep.subr.bf16.mxu0 0
        %506 = vmatpush1.bf16.msra.mxu0 0
        %507 = vmatprep.subr.bf16.mxu0 0
        %508 = vmatpush1.bf16.msra.mxu0 0
        %509 = vmatprep.subr.bf16.mxu0 0
        %510 = vmatpush1.bf16.msra.mxu0 0
        %511 = vmatprep.subr.bf16.mxu0 0
        %512 = vmatpush1.bf16.msra.mxu0 0
        %513 = vmatprep.subr.bf16.mxu0 0
        %514 = vmatpush1.bf16.msra.mxu0 0
        %515 = vmatprep.mubr.bf16.mxu0 0
        %516 = vmatmul.mubr.bf16.gmra.mrb[0].mxu0 %v418
        %v517 = vpop.f32.mrb[0].mxu0
        %v518 = vadd.f32 0.0, %v517
        %v519 = vpop.f32.mrb[0].mxu0
        %v520 = vpop.f32.mrb[0].mxu0
        %v521 = vadd.f32 0.0, %v520
        %v522 = vpop.f32.mrb[0].mxu0
        %523 = vdwg.mxu0
        %v524 = vadd.f32 %v416, %v518
        %v525 = vadd.f32 %v417, %v521
        %526 = vst.msk [vmem:[#allocation2] sm:$0xff] %vm353, %v524
        %527 = vst.msk [vmem:[#allocation2 + $0x8] sm:$0xff] %vm353, %v525
        %p528 = scmp.eq.s32.totalorder %s22, 1
        // Predicated region
        $region75: #{tpu_custom_call.1} parent=65 // pred_check
          %p529 = pneg %p528
        $region76: #{tpu_custom_call.1} parent=65 // pred_check_branch
          %531 = sbr.rel (%p529) target = $region78
        $region77: #{tpu_custom_call.1} parent=65 // pred_region
          %v532 = vld [vmem:[#allocation2] sm:$0xff]
          %v533 = vld [vmem:[#allocation2 + $0x8] sm:$0xff]
          %v534 = vpack.c.bf16 %v533, %v532
          %v536 = vunpack.c.l.b16 %v534
          %v537 = vunpack.c.h.b16 %v534
          %v538 = vpack.c.b16 %v536, %v536
          %v539 = vpack.c.b16 %v537, %v537
          %vm542 = vcmask 519168
          %543 = vst.msk [vmem:[%s275] sm:$0xf] %vm542, %v538
          %544 = vst.msk [vmem:[%s275 + $0x4] sm:$0xf] %vm542, %v539
        $region78: #{tpu_custom_call.1} parent=65 // pred_fallthru
          _
        %s545 = sand.u32 %s115, 1
        %s546 = scalar_lea.sflag [#allocation5], %s545
        %s547 = sand.u32 %s115, 1
        %s548 = smul.addr %s547, 8
        %s549 = scalar_lea.vmem [#allocation4], %s548
        // Predicated region
        $region79: #{tpu_custom_call.1} parent=65 // pred_check
          %p550 = pneg %p125
        $region80: #{tpu_custom_call.1} parent=65 // pred_check_branch
          %552 = sbr.rel (%p550) target = $region82
        $region81: #{tpu_custom_call.1} parent=65 // pred_region
          %s553 = smul.u32 2, %s21
          %s555 = ssub.s32 128, 128
          %556 = vsyncadd %s546, %s555
          %s557 = smul.addr %s553, 64
          %s558 = scalar_lea.hbm %s3, %s557
          %s559 = sshll.u32 %s549, 4
          %s560 = int_to_ptr.vmem [resolvable:$true] %s559
          %565 = dma.vmem_to_hbm [thread:$0]  %s560, 128, %s558, %s546, 64, 64, 4
        $region82: #{tpu_custom_call.1} parent=65 // pred_fallthru
          _
      $region66: #{tpu_custom_call.1} parent=5 // pred_fallthru
        _
      %p566 = scmp.le.s32.totalorder 2, %s12
      // Predicated region
      $region83: #{tpu_custom_call.1} parent=5 // pred_check
        %p567 = pneg %p566
      $region84: #{tpu_custom_call.1} parent=5 // pred_check_branch
        %569 = sbr.rel (%p567) target = $region86
      $region85: #{tpu_custom_call.1} parent=5 // pred_region
        %s570 = ssub.s32 %s12, 2
        // Predicated region
        $region87: #{tpu_custom_call.1} parent=85 // pred_check
          %p571 = pneg %p131
        $region88: #{tpu_custom_call.1} parent=85 // pred_check_branch
          %573 = sbr.rel (%p571) target = $region90
        $region89: #{tpu_custom_call.1} parent=85 // pred_region
          %s574 = sand.u32 %s116, 1
          %s575 = scalar_lea.sflag [#allocation5], %s574
          %s576 = sand.u32 %s116, 1
          %s577 = smul.addr %s576, 8
          %s578 = scalar_lea.vmem [#allocation4], %s577
          %579 = dma.done %s575, 128
        $region90: #{tpu_custom_call.1} parent=85 // pred_fallthru
          _
      $region86: #{tpu_custom_call.1} parent=5 // pred_fallthru
        _
    $region6: #{tpu_custom_call.1} parent=1 // loop_footer
      %s16 = sadd.s32 1, %s12
    $region7: #{tpu_custom_call.1} parent=1 // loop_footer_branch
      %11 = sbr.rel target = $region3
    $region8: #{tpu_custom_call.1} parent=1 // loop_exit
      _
    %580 = vsyncpa [#allocation5], 1
    %s581 = scalar_lea.sflag [#allocation5], 1
    %582 = vsyncpa %s581, 1

</llo_original>
